<compile_context>
chip_gen: v6e
topology: v6e:2x2x1
jax: 0.10.0
libtpu: 0.0.40
codegen_flags: <defaults>
</compile_context>

<pallas_src>
import jax
import jax.numpy as jnp
import numpy as np
from jax.experimental import pallas as pl
from jax.experimental.pallas import tpu as pltpu


def _pagan_rl_alpha_kernel(logits_ref, gumbel_ref, arcs_ref, logp_ref, ent_ref):
    """logits_ref/gumbel_ref: (NB, L) f32 VMEM.  Outputs: (1, L) each."""
    logits = logits_ref[...]            # (NB, L)
    gumbel = gumbel_ref[...]            # (NB, L)
    nb = logits.shape[0]

    # --- Categorical sampling via the Gumbel-max trick (argmax over branches).
    z = logits + gumbel
    z_max = jnp.max(z, axis=0, keepdims=True)                              # (1, L)
    branch_iota = jax.lax.broadcasted_iota(jnp.int32, logits.shape, 0)     # (NB, L)
    # First index attaining the max (ties have probability zero with
    # continuous Gumbel noise; break them like argmax for determinism).
    cand = jnp.where(z >= z_max, branch_iota, nb)
    sampled = jnp.min(cand, axis=0, keepdims=True)                         # (1, L) i32

    # --- Numerically stable log-softmax over the branch axis.
    m = jnp.max(logits, axis=0, keepdims=True)
    shifted = logits - m
    lse = m + jnp.log(jnp.sum(jnp.exp(shifted), axis=0, keepdims=True))
    logp = logits - lse                                                    # (NB, L)
    probs = jnp.exp(logp)

    onehot = branch_iota == sampled                                        # (NB, L)
    log_prob = jnp.sum(jnp.where(onehot, logp, 0.0), axis=0, keepdims=True)  # (1, L)
    entropy = -jnp.sum(probs * logp, axis=0, keepdims=True)                  # (1, L)

    arcs_ref[...] = sampled
    logp_ref[...] = log_prob
    ent_ref[...] = entropy


def pagan_rl_controller_alpha_forward(alpha, key):
    """Forward pass of PAGANRLControllerAlpha.

    alpha : (num_layers, num_branches) f32 — stacked nn.Parameter rows.
    key   : jax.random key for the Categorical samples.
    Returns (sampled_arcs, sample_log_prob, sample_entropy), each (1, num_layers).
    """
    num_layers, num_branches = alpha.shape
    # Branch-major / layer-minor layout inside the kernel (layers on lanes).
    logits_t = jnp.transpose(alpha).astype(jnp.float32)                    # (NB, L)
    gumbel = jax.random.gumbel(key, logits_t.shape, dtype=jnp.float32)

    vmem = pl.BlockSpec(memory_space=pltpu.MemorySpace.VMEM)
    out_shapes = (
        jax.ShapeDtypeStruct((1, num_layers), jnp.int32),    # torch: int64
        jax.ShapeDtypeStruct((1, num_layers), jnp.float32),
        jax.ShapeDtypeStruct((1, num_layers), jnp.float32),
    )
    return pl.pallas_call(
        _pagan_rl_alpha_kernel,
        out_shape=out_shapes,
        in_specs=[vmem, vmem],
        out_specs=(vmem, vmem, vmem),
    )(logits_t, gumbel)


def get_batched_arcs(sampled_arcs, bs):
    """batched_arcs = sampled_arcs.repeat(bs, 1): pure replication, kept outside the kernel."""
    return jnp.tile(sampled_arcs, (bs, 1))


if __name__ == "__main__":
    num_layers = 8
    num_branches = 4
    bs = 2

    key = jax.random.PRNGKey(0)
    k_alpha, k_sample = jax.random.split(key)
    # alpha_i = 0.0001 * randn(1, num_branches) as in the module __init__,
    # stacked into a single (num_layers, num_branches) matrix.
    alpha = 1e-4 * jax.random.normal(
        k_alpha, (num_layers, num_branches), dtype=jnp.float32)

    outs = pagan_rl_controller_alpha_forward(alpha, k_sample)
    sampled_arcs, sample_log_prob, sample_entropy = jax.block_until_ready(outs)

    # --- Pure-JAX reference using the identical Gumbel noise. ---
    gumbel = jax.random.gumbel(
        k_sample, (num_branches, num_layers), dtype=jnp.float32)
    z = alpha.T + gumbel
    ref_arcs = jnp.argmax(z, axis=0)[None, :]                              # (1, L)
    logp_ref = jax.nn.log_softmax(alpha, axis=-1)                          # (L, NB)
    ref_logp = jnp.take_along_axis(logp_ref, ref_arcs.T, axis=1).T         # (1, L)
    ref_ent = -jnp.sum(jnp.exp(logp_ref) * logp_ref, axis=-1)[None, :]     # (1, L)

    arcs = np.asarray(sampled_arcs)
    assert arcs.shape == (1, num_layers), arcs.shape
    assert np.all((arcs >= 0) & (arcs < num_branches))
    assert np.array_equal(arcs.astype(np.int64),
                          np.asarray(ref_arcs).astype(np.int64))
    np.testing.assert_allclose(np.asarray(sample_log_prob), np.asarray(ref_logp),
                               rtol=1e-5, atol=1e-5)
    np.testing.assert_allclose(np.asarray(sample_entropy), np.asarray(ref_ent),
                               rtol=1e-5, atol=1e-5)

    batched_arcs = get_batched_arcs(sampled_arcs, bs)
    batched_arcs = jax.block_until_ready(batched_arcs)
    assert batched_arcs.shape == (bs, num_layers)
    assert np.array_equal(np.asarray(batched_arcs), np.tile(arcs, (bs, 1)))

    print("KERNEL_OK")
</pallas_src>

<mosaic_0001>
module attributes {stable_mosaic.version = 11 : i64} {
  func.func @_pagan_rl_alpha_kernel(%arg0: memref<4x8xf32, #tpu.memory_space<vmem>>, %arg1: memref<4x8xf32, #tpu.memory_space<vmem>>, %arg2: memref<1x8xi32, #tpu.memory_space<vmem>>, %arg3: memref<1x8xf32, #tpu.memory_space<vmem>>, %arg4: memref<1x8xf32, #tpu.memory_space<vmem>>) attributes {dimension_semantics = [], scalar_prefetch = 0 : i64, scratch_operands = 0 : i64, tpu.core_type = #tpu.core_type<tc>} {
    %c0 = arith.constant 0 : index
    %c0_0 = arith.constant 0 : index
    %0 = vector.load %arg0[%c0, %c0_0] : memref<4x8xf32, #tpu.memory_space<vmem>>, vector<4x8xf32>
    %c0_1 = arith.constant 0 : index
    %c0_2 = arith.constant 0 : index
    %1 = vector.load %arg1[%c0_1, %c0_2] : memref<4x8xf32, #tpu.memory_space<vmem>>, vector<4x8xf32>
    %2 = arith.addf %0, %1 : vector<4x8xf32>
    %cst = arith.constant dense<0xFF800000> : vector<8xf32>
    %3 = vector.multi_reduction <maximumf>, %2, %cst [0] : vector<4x8xf32> to vector<8xf32>
    %4 = vector.shape_cast %3 : vector<8xf32> to vector<1x8xf32>
    %5 = tpu.iota {dimensions = array<i32: 0>} : vector<4x8xi32>
    %6 = vector.broadcast %4 : vector<1x8xf32> to vector<4x8xf32>
    %7 = arith.cmpf oge, %2, %6 : vector<4x8xf32>
    %c4_i32 = arith.constant 4 : i32
    %8 = vector.broadcast %c4_i32 : i32 to vector<4x8xi32>
    %9 = arith.select %7, %5, %8 : vector<4x8xi1>, vector<4x8xi32>
    %cst_3 = arith.constant dense<2147483647> : vector<8xi32>
    %10 = vector.multi_reduction <minsi>, %9, %cst_3 [0] : vector<4x8xi32> to vector<8xi32>
    %11 = vector.shape_cast %10 : vector<8xi32> to vector<1x8xi32>
    %cst_4 = arith.constant dense<0xFF800000> : vector<8xf32>
    %12 = vector.multi_reduction <maximumf>, %0, %cst_4 [0] : vector<4x8xf32> to vector<8xf32>
    %13 = vector.shape_cast %12 : vector<8xf32> to vector<1x8xf32>
    %14 = vector.broadcast %13 : vector<1x8xf32> to vector<4x8xf32>
    %15 = arith.subf %0, %14 : vector<4x8xf32>
    %16 = math.exp %15 : vector<4x8xf32>
    %cst_5 = arith.constant dense<0.000000e+00> : vector<8xf32>
    %17 = vector.multi_reduction <add>, %16, %cst_5 [0] : vector<4x8xf32> to vector<8xf32>
    %18 = vector.shape_cast %17 : vector<8xf32> to vector<1x8xf32>
    %19 = math.log %18 : vector<1x8xf32>
    %20 = arith.addf %13, %19 : vector<1x8xf32>
    %21 = vector.broadcast %20 : vector<1x8xf32> to vector<4x8xf32>
    %22 = arith.subf %0, %21 : vector<4x8xf32>
    %23 = math.exp %22 : vector<4x8xf32>
    %24 = vector.broadcast %11 : vector<1x8xi32> to vector<4x8xi32>
    %25 = arith.cmpi eq, %5, %24 : vector<4x8xi32>
    %cst_6 = arith.constant 0.000000e+00 : f32
    %26 = vector.broadcast %cst_6 : f32 to vector<4x8xf32>
    %27 = arith.select %25, %22, %26 : vector<4x8xi1>, vector<4x8xf32>
    %cst_7 = arith.constant dense<0.000000e+00> : vector<8xf32>
    %28 = vector.multi_reduction <add>, %27, %cst_7 [0] : vector<4x8xf32> to vector<8xf32>
    %29 = vector.shape_cast %28 : vector<8xf32> to vector<1x8xf32>
    %30 = arith.mulf %23, %22 : vector<4x8xf32>
    %cst_8 = arith.constant dense<0.000000e+00> : vector<8xf32>
    %31 = vector.multi_reduction <add>, %30, %cst_8 [0] : vector<4x8xf32> to vector<8xf32>
    %32 = vector.shape_cast %31 : vector<8xf32> to vector<1x8xf32>
    %cst_9 = arith.constant 0.000000e+00 : f32
    %33 = vector.broadcast %cst_9 : f32 to vector<1x8xf32>
    %34 = arith.subf %33, %32 : vector<1x8xf32>
    %c0_10 = arith.constant 0 : index
    %c0_11 = arith.constant 0 : index
    %35 = vector.load %arg2[%c0_10, %c0_11] : memref<1x8xi32, #tpu.memory_space<vmem>>, vector<1x8xi32>
    tpu.vector_store %arg2[%c0_10, %c0_11], %11 {strides = array<i32>} : memref<1x8xi32, #tpu.memory_space<vmem>>, vector<1x8xi32>,
    %c0_12 = arith.constant 0 : index
    %c0_13 = arith.constant 0 : index
    %36 = vector.load %arg3[%c0_12, %c0_13] : memref<1x8xf32, #tpu.memory_space<vmem>>, vector<1x8xf32>
    tpu.vector_store %arg3[%c0_12, %c0_13], %29 {strides = array<i32>} : memref<1x8xf32, #tpu.memory_space<vmem>>, vector<1x8xf32>,
    %c0_14 = arith.constant 0 : index
    %c0_15 = arith.constant 0 : index
    %37 = vector.load %arg4[%c0_14, %c0_15] : memref<1x8xf32, #tpu.memory_space<vmem>>, vector<1x8xf32>
    tpu.vector_store %arg4[%c0_14, %c0_15], %34 {strides = array<i32>} : memref<1x8xf32, #tpu.memory_space<vmem>>, vector<1x8xf32>,
    return
  }
}

</mosaic_0001>

<llo_original>
// kernel: tpu_custom_call.1
$region0: #{tpu_custom_call.1}
  #allocation0 [shape = 'u32[]', space=smem, size = 0x4, offset = 0x4, fixed_abs, tag = 'smem constant byte address 0x4 - core index']
  #allocation1 [shape = 'u32[144,128]{1,0:T(1,128)}', space=vmem, size = 0x12000, scoped, tag = 'internal scratch']
  %s0 = inlined_call_operand.hbm [shape: f32[4,8], index: 0, kind: input, shape index: {}]
  %s1 = inlined_call_operand.hbm [shape: f32[4,8], index: 1, kind: input, shape index: {}]
  %s2 = inlined_call_operand.hbm [shape: s32[1,8], index: 2, kind: output, shape index: {0}]
  %s3 = inlined_call_operand.hbm [shape: f32[1,8], index: 3, kind: output, shape index: {1}]
  %s4 = inlined_call_operand.hbm [shape: f32[1,8], index: 4, kind: output, shape index: {2}]
  %5 = xla_tuple %s2, %s3, %s4
  %s6 = sld [smem:[#allocation0]]
  $region42: #{tpu_custom_call.1} parent=0
    _
  %s8 = ssub.s32 1, %s6
  %s9 = scalar_select 0, %s8, %s6
  $region1: #{tpu_custom_call.1} parent=0
    #allocation2 [shape = 'u8[2048]{0}', space=vmem, size = 0x800, scoped, tag = 'input window, operand 0, single buffered']
    #allocation3 [shape = 's32[1]{0}', space=sflag, size = 0x4, scoped, tag = 'scoped memory for tpu_custom_call.1']
    #allocation4 [shape = 's32[1]{0}', space=sflag, size = 0x4, scoped, tag = 'scoped memory for tpu_custom_call.1']
    #allocation5 [shape = 'u8[2048]{0}', space=vmem, size = 0x800, scoped, tag = 'input window, operand 1, single buffered']
    #allocation6 [shape = 's32[1]{0}', space=sflag, size = 0x4, scoped, tag = 'scoped memory for tpu_custom_call.1']
    #allocation7 [shape = 'u8[512]{0}', space=vmem, size = 0x400, scoped, tag = 'output window, operand 0, single buffered']
    #allocation8 [shape = 'u8[512]{0}', space=vmem, size = 0x400, scoped, tag = 'output window, operand 1, single buffered']
    #allocation9 [shape = 's32[1]{0}', space=sflag, size = 0x4, scoped, tag = 'scoped memory for tpu_custom_call.1']
    #allocation10 [shape = 'u8[512]{0}', space=vmem, size = 0x400, scoped, tag = 'output window, operand 2, single buffered']
    %10 = vsyncpa [#allocation3], 0
    %11 = vsyncpa [#allocation6], 0
    %12 = vsyncpa [#allocation4], 0
    %13 = vsyncpa [#allocation9], 0
    // Predicated region
    $region2: #{tpu_custom_call.1} parent=1 // pred_check
      _
    $region3: #{tpu_custom_call.1} parent=1 // pred_check_branch
      %15 = sbr.rel (0) target = $region5
    $region4: #{tpu_custom_call.1} parent=1 // pred_region
      %s17 = ssub.s32 64, 64
      %18 = vsyncadd [#allocation3], %s17
      %s20 = sshll.u32 [#allocation2], 4
      %s21 = int_to_ptr.vmem [resolvable:$true] %s20
      %23 = dma.hbm_to_vmem [thread:$0]  %s0, 64, %s21, [#allocation3]
    $region5: #{tpu_custom_call.1} parent=1 // pred_fallthru
      _
    // Predicated region
    $region6: #{tpu_custom_call.1} parent=1 // pred_check
      _
    $region7: #{tpu_custom_call.1} parent=1 // pred_check_branch
      %25 = sbr.rel (0) target = $region9
    $region8: #{tpu_custom_call.1} parent=1 // pred_region
      %s27 = ssub.s32 64, 64
      %28 = vsyncadd [#allocation6], %s27
      %s30 = sshll.u32 [#allocation5], 4
      %s31 = int_to_ptr.vmem [resolvable:$true] %s30
      %33 = dma.hbm_to_vmem [thread:$0]  %s1, 64, %s31, [#allocation6]
    $region9: #{tpu_custom_call.1} parent=1 // pred_fallthru
      _
    // Predicated region
    $region10: #{tpu_custom_call.1} parent=1 // pred_check
      _
    $region11: #{tpu_custom_call.1} parent=1 // pred_check_branch
      %35 = sbr.rel (0) target = $region13
    $region12: #{tpu_custom_call.1} parent=1 // pred_region
      %36 = dma.done [#allocation3], 64
    $region13: #{tpu_custom_call.1} parent=1 // pred_fallthru
      _
    // Predicated region
    $region14: #{tpu_custom_call.1} parent=1 // pred_check
      _
    $region15: #{tpu_custom_call.1} parent=1 // pred_check_branch
      %38 = sbr.rel (0) target = $region17
    $region16: #{tpu_custom_call.1} parent=1 // pred_region
      %39 = dma.done [#allocation6], 64
    $region17: #{tpu_custom_call.1} parent=1 // pred_fallthru
      _
    %v40 = vld [vmem:[#allocation2] sm:$0xf]
    %v41 = vld [vmem:[#allocation5] sm:$0xf]
    %v42 = vadd.f32 %v40, %v41
    %vm43 = vcmask 60416
    %v44 = vsel %vm43, %v42, -inf
    %v45 = vrot.slane %v44, 4
    %v46 = vmax.f32 %v44, %v45
    %v47 = vrot.slane %v46, 2
    %v48 = vmax.f32 %v46, %v47
    %v49 = vrot.slane %v48, 1
    %v50 = vmax.f32 %v48, %v49
    %v51 = vlaneseq
    %v52 = vshrl.u32 %v51, 7
    %vm53 = vcmp.ge.f32.partialorder %v42, %v50
    %v54 = vsel %vm53, %v52, 4
    %v55 = vsel %vm43, %v54, 2147483647
    %v56 = vrot.slane %v55, 4
    %vm57 = vcmp.lt.s32.totalorder %v55, %v56
    %v58 = vsel %vm57, %v55, %v56
    %v59 = vrot.slane %v58, 2
    %vm60 = vcmp.lt.s32.totalorder %v58, %v59
    %v61 = vsel %vm60, %v58, %v59
    %v62 = vrot.slane %v61, 1
    %vm63 = vcmp.lt.s32.totalorder %v61, %v62
    %v64 = vsel %vm63, %v61, %v62
    %v65 = vsel %vm43, %v40, -inf
    %v66 = vrot.slane %v65, 4
    %v67 = vmax.f32 %v65, %v66
    %v68 = vrot.slane %v67, 2
    %v69 = vmax.f32 %v67, %v68
    %v70 = vrot.slane %v69, 1
    %v71 = vmax.f32 %v69, %v70
    %v72 = vsub.f32 %v40, %v71
    %v73 = vmul.f32 %v72, 1.442695
    %v74 = vpow.pop %v73
    %v75 = vsel %vm43, %v74, 0.0
    %v76 = vrot.slane %v75, 4
    %v77 = vadd.f32 %v75, %v76
    %v78 = vrot.slane %v77, 2
    %v79 = vadd.f32 %v77, %v78
    %v80 = vrot.slane %v79, 1
    %v81 = vadd.f32 %v79, %v80
    %v82 = vlog2.pop %v81
    %v83 = vmul.f32 %v82, 0.6931472
    %v84 = vadd.f32 %v71, %v83
    %v85 = vsub.f32 %v40, %v84
    %v86 = vmul.f32 %v85, 1.442695
    %v87 = vpow.pop %v86
    %vm88 = vcmp.eq.s32.totalorder %v52, %v64
    %v89 = vsel %vm88, %v85, 0.0
    %v90 = vsel %vm43, %v89, 0.0
    %v91 = vrot.slane %v90, 4
    %v92 = vadd.f32 %v90, %v91
    %v93 = vrot.slane %v92, 2
    %v94 = vadd.f32 %v92, %v93
    %v95 = vrot.slane %v94, 1
    %v96 = vadd.f32 %v94, %v95
    %v97 = vmul.f32 %v87, %v85
    %v98 = vsel %vm43, %v97, 0.0
    %v99 = vrot.slane %v98, 4
    %v100 = vadd.f32 %v98, %v99
    %v101 = vrot.slane %v100, 2
    %v102 = vadd.f32 %v100, %v101
    %v103 = vrot.slane %v102, 1
    %v104 = vadd.f32 %v102, %v103
    %v105 = vsub.f32 0.0, %v104
    %vm106 = vcmask 57344
    %107 = vst.msk [vmem:[#allocation7] sm:$0x1] %vm106, %v64
    %108 = vst.msk [vmem:[#allocation8] sm:$0x1] %vm106, %v96
    %109 = vst.msk [vmem:[#allocation10] sm:$0x1] %vm106, %v105
    // Predicated region
    $region18: #{tpu_custom_call.1} parent=1 // pred_check
      _
    $region19: #{tpu_custom_call.1} parent=1 // pred_check_branch
      %111 = sbr.rel (0) target = $region21
    $region20: #{tpu_custom_call.1} parent=1 // pred_region
      %s113 = ssub.s32 16, 16
      %114 = vsyncadd [#allocation4], %s113
      %s116 = sshll.u32 [#allocation7], 4
      %s117 = int_to_ptr.vmem [resolvable:$true] %s116
      %119 = dma.vmem_to_hbm [thread:$0]  %s117, 16, %s2, [#allocation4]
    $region21: #{tpu_custom_call.1} parent=1 // pred_fallthru
      _
    // Predicated region
    $region22: #{tpu_custom_call.1} parent=1 // pred_check
      _
    $region23: #{tpu_custom_call.1} parent=1 // pred_check_branch
      %121 = sbr.rel (0) target = $region25
    $region24: #{tpu_custom_call.1} parent=1 // pred_region
      %s123 = ssub.s32 16, 16
      %124 = vsyncadd [#allocation9], %s123
      %s126 = sshll.u32 [#allocation8], 4
      %s127 = int_to_ptr.vmem [resolvable:$true] %s126
      %129 = dma.vmem_to_hbm [thread:$0]  %s127, 16, %s3, [#allocation9]
    $region25: #{tpu_custom_call.1} parent=1 // pred_fallthru
      _
    // Predicated region
    $region26: #{tpu_custom_call.1} parent=1 // pred_check
      _
    $region27: #{tpu_custom_call.1} parent=1 // pred_check_branch
      %131 = sbr.rel (0) target = $region29
    $region28: #{tpu_custom_call.1} parent=1 // pred_region
      %s133 = ssub.s32 16, 16
      %134 = vsyncadd [#allocation9], %s133
      %s136 = sshll.u32 [#allocation10], 4
      %s137 = int_to_ptr.vmem [resolvable:$true] %s136
      %139 = dma.vmem_to_hbm [thread:$0]  %s137, 16, %s4, [#allocation9]
    $region29: #{tpu_custom_call.1} parent=1 // pred_fallthru
      _
    // Predicated region
    $region30: #{tpu_custom_call.1} parent=1 // pred_check
      _
    $region31: #{tpu_custom_call.1} parent=1 // pred_check_branch
      %141 = sbr.rel (0) target = $region33
    $region32: #{tpu_custom_call.1} parent=1 // pred_region
      %142 = dma.done [#allocation4], 16
    $region33: #{tpu_custom_call.1} parent=1 // pred_fallthru
      _
    // Predicated region
    $region34: #{tpu_custom_call.1} parent=1 // pred_check
      _
    $region35: #{tpu_custom_call.1} parent=1 // pred_check_branch
      %144 = sbr.rel (0) target = $region37
    $region36: #{tpu_custom_call.1} parent=1 // pred_region
      %145 = dma.done [#allocation9], 16
    $region37: #{tpu_custom_call.1} parent=1 // pred_fallthru
      _
    // Predicated region
    $region38: #{tpu_custom_call.1} parent=1 // pred_check
      _
    $region39: #{tpu_custom_call.1} parent=1 // pred_check_branch
      %147 = sbr.rel (0) target = $region41
    $region40: #{tpu_custom_call.1} parent=1 // pred_region
      %148 = dma.done [#allocation9], 16
    $region41: #{tpu_custom_call.1} parent=1 // pred_fallthru
      _
    %149 = vsyncpa [#allocation3], 1
    %150 = vsyncpa [#allocation6], 1
    %151 = vsyncpa [#allocation4], 1
    %152 = vsyncpa [#allocation9], 1

</llo_original>
